<compile_context>
chip_gen: v7x
topology: tpu7x:2x2x1
jax: 0.10.0
libtpu: 0.0.40
codegen_flags: <defaults>
</compile_context>

<pallas_src>
import jax
import jax.numpy as jnp
from jax.experimental import pallas as pl
from jax.experimental.pallas import tpu as pltpu

LANE = 128


def _round_up(n, m):
    return (n + m - 1) // m * m


def mlp_kernel(x_ref, w1_ref, b1_ref, w2_ref, b2_ref, w3_ref, b3_ref, o_ref):
    # x_ref:  [TB, Kp]  bf16
    # w1_ref: [Kp, Hp]  bf16, b1_ref: [1, Hp] f32
    # w2_ref: [Hp, Hp]  bf16, b2_ref: [1, Hp] f32
    # w3_ref: [Hp, Op]  bf16, b3_ref: [1, Op] f32
    # o_ref:  [TB, Op]  f32  (lane-dense; real output is column 0)
    x = x_ref[...]

    h1 = jnp.dot(x, w1_ref[...], preferred_element_type=jnp.float32) + b1_ref[...]
    h1 = jnp.maximum(h1, 0.0).astype(jnp.bfloat16)

    h2 = jnp.dot(h1, w2_ref[...], preferred_element_type=jnp.float32) + b2_ref[...]
    h2 = jnp.maximum(h2, 0.0).astype(jnp.bfloat16)

    out = jnp.dot(h2, w3_ref[...], preferred_element_type=jnp.float32) + b3_ref[...]
    o_ref[...] = out


def mlp_forward(x, params, *, max_tile=256):
    """x: [B, 2, 14, 14] float32 (NCHW). Returns [B, 1] float32."""
    w1, b1, w2, b2, w3, b3 = params      # padded, kernel-layout ([in, out]) params
    B = x.shape[0]
    x2d = x.reshape(B, -1)               # [B, 392], matches torch .view(-1, 2*14*14)
    K = x2d.shape[1]
    Kp = w1.shape[0]
    Op = w3.shape[1]

    # Batch tile: multiple of 8 (sublane rule), capped at max_tile; pad B up to
    # a whole number of tiles so the grid is exact.
    TB = min(max_tile, _round_up(B, 8))
    Bp = _round_up(B, TB)

    xp = jnp.pad(x2d.astype(jnp.float32), ((0, Bp - B), (0, Kp - K)))
    xb = xp.astype(jnp.bfloat16)

    def resident(shape):
        # Full-array block, same block index every grid step -> loaded once,
        # stays VMEM-resident across the whole batch loop.
        return pl.BlockSpec(shape, lambda i: (0, 0))

    out = pl.pallas_call(
        mlp_kernel,
        out_shape=jax.ShapeDtypeStruct((Bp, Op), jnp.float32),
        grid=(Bp // TB,),
        in_specs=[
            pl.BlockSpec((TB, Kp), lambda i: (i, 0)),
            resident(w1.shape), resident(b1.shape),
            resident(w2.shape), resident(b2.shape),
            resident(w3.shape), resident(b3.shape),
        ],
        out_specs=pl.BlockSpec((TB, Op), lambda i: (i, 0)),
        compiler_params=pltpu.CompilerParams(
            dimension_semantics=("parallel",)),
    )(xb, w1, b1, w2, b2, w3, b3)

    return out[:B, :1]


def xavier_uniform(key, fan_out, fan_in):
    # Matches torch.nn.init.xavier_uniform_ on a [fan_out, fan_in] weight.
    bound = (6.0 / (fan_in + fan_out)) ** 0.5
    return jax.random.uniform(key, (fan_out, fan_in), jnp.float32, -bound, bound)


def init_params(key, hidden_dim, in_dim):
    """Returns (kernel_params, torch_layout_weights)."""
    k1, k2, k3 = jax.random.split(key, 3)
    w1 = xavier_uniform(k1, hidden_dim, in_dim)       # torch layout [out, in]
    w2 = xavier_uniform(k2, hidden_dim, hidden_dim)
    w3 = xavier_uniform(k3, 1, hidden_dim)

    Kp = _round_up(in_dim, LANE)                      # 392 -> 512
    Hp = _round_up(hidden_dim, LANE)                  # 32  -> 128
    Op = LANE                                         # 1   -> 128 (lane-dense store)

    # Kernel consumes [in, out] bf16 weights, zero-padded; padded rows/cols are
    # zero and biases are zero, so the padded lanes stay exactly zero.
    w1k = jnp.zeros((Kp, Hp), jnp.bfloat16).at[:in_dim, :hidden_dim].set(
        w1.T.astype(jnp.bfloat16))
    w2k = jnp.zeros((Hp, Hp), jnp.bfloat16).at[:hidden_dim, :hidden_dim].set(
        w2.T.astype(jnp.bfloat16))
    w3k = jnp.zeros((Hp, Op), jnp.bfloat16).at[:hidden_dim, :1].set(
        w3.T.astype(jnp.bfloat16))
    b1k = jnp.zeros((1, Hp), jnp.float32)             # module inits biases to zero
    b2k = jnp.zeros((1, Hp), jnp.float32)
    b3k = jnp.zeros((1, Op), jnp.float32)

    return (w1k, b1k, w2k, b2k, w3k, b3k), (w1, w2, w3)


def reference_forward_f32(x, torch_weights):
    # Pure-JAX f32 forward, mirrors the PyTorch module exactly.
    w1, w2, w3 = torch_weights
    h = x.reshape(x.shape[0], -1)
    h = jnp.maximum(h @ w1.T, 0.0)
    h = jnp.maximum(h @ w2.T, 0.0)
    return h @ w3.T


def reference_forward_bf16(x, torch_weights):
    # Mirrors the kernel's precision: bf16 operands, f32 accumulation, f32 ReLU.
    w1, w2, w3 = torch_weights
    h = x.reshape(x.shape[0], -1).astype(jnp.bfloat16)
    h = jnp.maximum(
        jnp.dot(h, w1.T.astype(jnp.bfloat16), preferred_element_type=jnp.float32),
        0.0).astype(jnp.bfloat16)
    h = jnp.maximum(
        jnp.dot(h, w2.T.astype(jnp.bfloat16), preferred_element_type=jnp.float32),
        0.0).astype(jnp.bfloat16)
    return jnp.dot(h, w3.T.astype(jnp.bfloat16), preferred_element_type=jnp.float32)


if __name__ == "__main__":
    key = jax.random.PRNGKey(0)
    kx, kp = jax.random.split(key)

    batch = 16
    hidden_dim = 32           # small hidden size for the synthetic run
    in_dim = 2 * 14 * 14      # grey_scale=False -> 392

    x = jax.random.normal(kx, (batch, 2, 14, 14), jnp.float32)
    params, torch_weights = init_params(kp, hidden_dim, in_dim)

    # max_tile=8 -> TB=8, grid=(2,): exercises the batch-tiled pipeline even at
    # this tiny size. At realistic batch sizes TB grows to 256 automatically.
    out = mlp_forward(x, params, max_tile=8)
    out = jax.block_until_ready(out)
    assert out.shape == (batch, 1), out.shape

    # Tight check vs a JAX reference at identical (bf16-operand) precision.
    ref_bf16 = reference_forward_bf16(x, torch_weights)
    assert jnp.allclose(out, ref_bf16, atol=1e-3, rtol=1e-3), (
        float(jnp.max(jnp.abs(out - ref_bf16))))

    # Sanity check vs the full-f32 PyTorch-equivalent forward (bf16 rounding only).
    ref_f32 = reference_forward_f32(x, torch_weights)
    assert jnp.allclose(out, ref_f32, atol=1e-1, rtol=1e-1), (
        float(jnp.max(jnp.abs(out - ref_f32))))

    print("KERNEL_OK")
</pallas_src>

<mosaic_0001>
module attributes {stable_mosaic.version = 11 : i64} {
  func.func @mlp_kernel(%arg0: i32, %arg1: memref<8x512xbf16, #tpu.memory_space<vmem>>, %arg2: memref<512x128xbf16, #tpu.memory_space<vmem>>, %arg3: memref<1x128xf32, #tpu.memory_space<vmem>>, %arg4: memref<128x128xbf16, #tpu.memory_space<vmem>>, %arg5: memref<1x128xf32, #tpu.memory_space<vmem>>, %arg6: memref<128x128xbf16, #tpu.memory_space<vmem>>, %arg7: memref<1x128xf32, #tpu.memory_space<vmem>>, %arg8: memref<8x128xf32, #tpu.memory_space<vmem>>) attributes {dimension_semantics = [#tpu.dimension_semantics<parallel>], iteration_bounds = array<i64: 2>, scalar_prefetch = 0 : i64, scratch_operands = 0 : i64, tpu.core_type = #tpu.core_type<tc>, window_params = [{transform_indices = @transform_0, window_bounds = array<i64: 8, 512>}, {pipeline_mode = #tpu.pipeline_mode<synchronous>, transform_indices = @transform_1, window_bounds = array<i64: 512, 128>}, {pipeline_mode = #tpu.pipeline_mode<synchronous>, transform_indices = @transform_2, window_bounds = array<i64: 1, 128>}, {pipeline_mode = #tpu.pipeline_mode<synchronous>, transform_indices = @transform_3, window_bounds = array<i64: 128, 128>}, {pipeline_mode = #tpu.pipeline_mode<synchronous>, transform_indices = @transform_4, window_bounds = array<i64: 1, 128>}, {pipeline_mode = #tpu.pipeline_mode<synchronous>, transform_indices = @transform_5, window_bounds = array<i64: 128, 128>}, {pipeline_mode = #tpu.pipeline_mode<synchronous>, transform_indices = @transform_6, window_bounds = array<i64: 1, 128>}, {transform_indices = @transform_7, window_bounds = array<i64: 8, 128>}]} {
    %c0 = arith.constant 0 : index
    %c0_0 = arith.constant 0 : index
    %0 = vector.load %arg1[%c0, %c0_0] : memref<8x512xbf16, #tpu.memory_space<vmem>>, vector<8x512xbf16>
    %c0_1 = arith.constant 0 : index
    %c0_2 = arith.constant 0 : index
    %1 = vector.load %arg2[%c0_1, %c0_2] : memref<512x128xbf16, #tpu.memory_space<vmem>>, vector<512x128xbf16>
    %cst = arith.constant dense<0.000000e+00> : vector<8x128xf32>
    %2 = tpu.matmul %0, %1, %cst {dimension_numbers = #tpu.dot_dimension_numbers<[1], [0], [0], [1], [0, 0, 1, 1], [], []>} : vector<8x512xbf16>, vector<512x128xbf16>, vector<8x128xf32> -> vector<8x128xf32>
    %c0_3 = arith.constant 0 : index
    %c0_4 = arith.constant 0 : index
    %3 = vector.load %arg3[%c0_3, %c0_4] : memref<1x128xf32, #tpu.memory_space<vmem>>, vector<1x128xf32>
    %4 = vector.broadcast %3 : vector<1x128xf32> to vector<8x128xf32>
    %5 = arith.addf %2, %4 : vector<8x128xf32>
    %cst_5 = arith.constant 0.000000e+00 : f32
    %6 = vector.broadcast %cst_5 : f32 to vector<8x128xf32>
    %7 = arith.maximumf %5, %6 : vector<8x128xf32>
    %8 = arith.truncf %7 : vector<8x128xf32> to vector<8x128xbf16>
    %c0_6 = arith.constant 0 : index
    %c0_7 = arith.constant 0 : index
    %9 = vector.load %arg4[%c0_6, %c0_7] : memref<128x128xbf16, #tpu.memory_space<vmem>>, vector<128x128xbf16>
    %cst_8 = arith.constant dense<0.000000e+00> : vector<8x128xf32>
    %10 = tpu.matmul %8, %9, %cst_8 {dimension_numbers = #tpu.dot_dimension_numbers<[1], [0], [0], [1], [0, 0, 1, 1], [], []>} : vector<8x128xbf16>, vector<128x128xbf16>, vector<8x128xf32> -> vector<8x128xf32>
    %c0_9 = arith.constant 0 : index
    %c0_10 = arith.constant 0 : index
    %11 = vector.load %arg5[%c0_9, %c0_10] : memref<1x128xf32, #tpu.memory_space<vmem>>, vector<1x128xf32>
    %12 = vector.broadcast %11 : vector<1x128xf32> to vector<8x128xf32>
    %13 = arith.addf %10, %12 : vector<8x128xf32>
    %cst_11 = arith.constant 0.000000e+00 : f32
    %14 = vector.broadcast %cst_11 : f32 to vector<8x128xf32>
    %15 = arith.maximumf %13, %14 : vector<8x128xf32>
    %16 = arith.truncf %15 : vector<8x128xf32> to vector<8x128xbf16>
    %c0_12 = arith.constant 0 : index
    %c0_13 = arith.constant 0 : index
    %17 = vector.load %arg6[%c0_12, %c0_13] : memref<128x128xbf16, #tpu.memory_space<vmem>>, vector<128x128xbf16>
    %cst_14 = arith.constant dense<0.000000e+00> : vector<8x128xf32>
    %18 = tpu.matmul %16, %17, %cst_14 {dimension_numbers = #tpu.dot_dimension_numbers<[1], [0], [0], [1], [0, 0, 1, 1], [], []>} : vector<8x128xbf16>, vector<128x128xbf16>, vector<8x128xf32> -> vector<8x128xf32>
    %c0_15 = arith.constant 0 : index
    %c0_16 = arith.constant 0 : index
    %19 = vector.load %arg7[%c0_15, %c0_16] : memref<1x128xf32, #tpu.memory_space<vmem>>, vector<1x128xf32>
    %20 = vector.broadcast %19 : vector<1x128xf32> to vector<8x128xf32>
    %21 = arith.addf %18, %20 : vector<8x128xf32>
    %c0_17 = arith.constant 0 : index
    %c0_18 = arith.constant 0 : index
    %22 = vector.load %arg8[%c0_17, %c0_18] : memref<8x128xf32, #tpu.memory_space<vmem>>, vector<8x128xf32>
    tpu.vector_store %arg8[%c0_17, %c0_18], %21 {strides = array<i32>} : memref<8x128xf32, #tpu.memory_space<vmem>>, vector<8x128xf32>,
    return
  }
  func.func @transform_0(%arg0: i32) -> (i32, i32) {
    %c0_i32 = arith.constant 0 : i32
    %c0_i32_0 = arith.constant 0 : i32
    return %arg0, %c0_i32 : i32, i32
  }
  func.func @transform_1(%arg0: i32) -> (i32, i32) {
    %c0_i32 = arith.constant 0 : i32
    %c0_i32_0 = arith.constant 0 : i32
    %c0_i32_1 = arith.constant 0 : i32
    return %c0_i32, %c0_i32_0 : i32, i32
  }
  func.func @transform_2(%arg0: i32) -> (i32, i32) {
    %c0_i32 = arith.constant 0 : i32
    %c0_i32_0 = arith.constant 0 : i32
    %c0_i32_1 = arith.constant 0 : i32
    return %c0_i32, %c0_i32_0 : i32, i32
  }
  func.func @transform_3(%arg0: i32) -> (i32, i32) {
    %c0_i32 = arith.constant 0 : i32
    %c0_i32_0 = arith.constant 0 : i32
    %c0_i32_1 = arith.constant 0 : i32
    return %c0_i32, %c0_i32_0 : i32, i32
  }
  func.func @transform_4(%arg0: i32) -> (i32, i32) {
    %c0_i32 = arith.constant 0 : i32
    %c0_i32_0 = arith.constant 0 : i32
    %c0_i32_1 = arith.constant 0 : i32
    return %c0_i32, %c0_i32_0 : i32, i32
  }
  func.func @transform_5(%arg0: i32) -> (i32, i32) {
    %c0_i32 = arith.constant 0 : i32
    %c0_i32_0 = arith.constant 0 : i32
    %c0_i32_1 = arith.constant 0 : i32
    return %c0_i32, %c0_i32_0 : i32, i32
  }
  func.func @transform_6(%arg0: i32) -> (i32, i32) {
    %c0_i32 = arith.constant 0 : i32
    %c0_i32_0 = arith.constant 0 : i32
    %c0_i32_1 = arith.constant 0 : i32
    return %c0_i32, %c0_i32_0 : i32, i32
  }
  func.func @transform_7(%arg0: i32) -> (i32, i32) {
    %c0_i32 = arith.constant 0 : i32
    %c0_i32_0 = arith.constant 0 : i32
    return %arg0, %c0_i32 : i32, i32
  }
}

</mosaic_0001>

<llo_original>
// kernel: tpu_custom_call.1
$region0: #{tpu_custom_call.1}
  #allocation0 [shape = 'u32[]', space=smem, size = 0x4, offset = 0x4, fixed_abs, tag = 'smem constant byte address 0x4 - core index']
  #allocation1 [shape = 'u32[144,128]{1,0:T(1,128)}', space=vmem, size = 0x12000, scoped, tag = 'internal scratch']
  %s0 = inlined_call_operand.hbm [shape: bf16[16,512], index: 0, kind: input, shape index: {}]
  %s1 = inlined_call_operand.hbm [shape: bf16[512,128], index: 1, kind: input, shape index: {}]
  %s2 = inlined_call_operand.vmem [shape: f32[1,128], index: 2, kind: input, shape index: {}]
  %s3 = inlined_call_operand.hbm [shape: bf16[128,128], index: 3, kind: input, shape index: {}]
  %s4 = inlined_call_operand.vmem [shape: f32[1,128], index: 4, kind: input, shape index: {}]
  %s5 = inlined_call_operand.hbm [shape: bf16[128,128], index: 5, kind: input, shape index: {}]
  %s6 = inlined_call_operand.vmem [shape: f32[1,128], index: 6, kind: input, shape index: {}]
  %s7 = inlined_call_operand.hbm [shape: f32[16,128], index: 7, kind: output, shape index: {}]
  %s8 = sld [smem:[#allocation0]]
  $region77: #{tpu_custom_call.1} parent=0
    _
  %s10 = ssub.s32 1, %s8
  %s11 = scalar_select 0, %s10, %s8
  $region1: #{tpu_custom_call.1} parent=0
    #allocation2 [shape = 'u8[16384]{0}', space=vmem, size = 0x4000, scoped, tag = 'input window, operand 0']
    #allocation3 [shape = 's32[2]{0}', space=sflag, size = 0x8, scoped, tag = 'scoped memory for tpu_custom_call.1']
    #allocation4 [shape = 's32[2]{0}', space=sflag, size = 0x8, scoped, tag = 'scoped memory for tpu_custom_call.1']
    #allocation5 [shape = 'u8[131072]{0}', space=vmem, size = 0x20000, scoped, tag = 'input window, operand 1, single buffered']
    #allocation6 [shape = 's32[1]{0}', space=sflag, size = 0x4, scoped, tag = 'scoped memory for tpu_custom_call.1']
    #allocation7 [shape = 'u8[32768]{0}', space=vmem, size = 0x8000, scoped, tag = 'input window, operand 3, single buffered']
    #allocation8 [shape = 'u8[32768]{0}', space=vmem, size = 0x8000, scoped, tag = 'input window, operand 5, single buffered']
    #allocation9 [shape = 's32[1]{0}', space=sflag, size = 0x4, scoped, tag = 'scoped memory for tpu_custom_call.1']
    #allocation10 [shape = 'u8[8192]{0}', space=vmem, size = 0x2000, scoped, tag = 'output window, operand 0']
    %12 = vsyncpa [#allocation3], 0
    %s13 = scalar_lea.sflag [#allocation3], 1
    %14 = vsyncpa %s13, 0
    %15 = vsyncpa [#allocation6], 0
    %16 = vsyncpa [#allocation9], 0
    %17 = vsyncpa [#allocation4], 0
    %s18 = scalar_lea.sflag [#allocation4], 1
    %19 = vsyncpa %s18, 0
    loop: start=0, step=1, limit=4
    $region2: #{tpu_custom_call.1} parent=1 // loop_pre_header
      _
    $region3: #{tpu_custom_call.1} parent=1 // loop_header
      %s21 = sphi 0, %s25
      %p22 = scmp.ge.s32.totalorder %s21, 4
      %s31 = sphi 0, %s33
      %s34 = sphi 0, %s31
      %s35 = sphi 0, %s34
      %s51 = sphi 0, %s35
      %s55 = sphi 0, %s55
      %s57 = sphi 0, %s55
      %s58 = sphi 0, %s57
      %s72 = sphi 0, %s58
      %s76 = sphi 0, %s76
      %s78 = sphi 0, %s76
      %s79 = sphi 0, %s78
      %s93 = sphi 0, %s79
      %s97 = sphi 0, %s97
      %s99 = sphi 0, %s97
      %s100 = sphi 0, %s99
      %s114 = sphi 0, %s100
      %s118 = sphi 0, %s118
      %s120 = sphi 0, %s118
      %s121 = sphi 0, %s120
      %s135 = sphi 0, %s121
      %s139 = sphi 0, %s139
      %s141 = sphi 0, %s139
      %s142 = sphi 0, %s141
      %s156 = sphi 0, %s142
      %s160 = sphi 0, %s160
      %s162 = sphi 0, %s160
      %s163 = sphi 0, %s162
      %s177 = sphi 0, %s163
      %s183 = sphi 0, %s185
      %s186 = sphi 0, %s183
      %s187 = sphi 0, %s186
      %s203 = sphi 0, %s187
    $region4: #{tpu_custom_call.1} parent=1 // loop_header_branch
      %24 = sbr.rel (%p22) target = $region8
    $region5: #{tpu_custom_call.1} parent=1 // loop_body
      %s26 = ssub.s32 %s21, 1
      %s27 = ssub.s32 %s21, 2
      %s28 = sadd.s32 %s21, 1
      %s29 = ssub.s32 %s21, %s28
      %p30 = scmp.eq.s32.totalorder %s29, 0
      %s32 = sadd.s32 %s31, 1
      %s33 = scalar_select %p30, %s31, %s32
      %p36 = pneg %p30
      %p37 = scmp.eq.s32.totalorder %s21, 1
      %p38 = por %p36, %p37
      %p39 = scmp.ne.s32.totalorder %s31, %s34
      %p40 = scmp.eq.s32.totalorder %s21, 0
      %p41 = por %p39, %p40
      %p42 = scmp.ne.s32.totalorder %s31, %s34
      %p43 = scmp.eq.s32.totalorder %s26, 1
      %p44 = por %p42, %p43
      %p45 = scmp.ne.s32.totalorder %s34, %s35
      %p46 = scmp.eq.s32.totalorder %s26, 0
      %p47 = por %p45, %p46
      %p48 = scmp.ne.s32.totalorder %s34, %s35
      %p49 = scmp.eq.s32.totalorder %s27, 1
      %p50 = por %p48, %p49
      %p52 = scmp.ne.s32.totalorder %s35, %s51
      %p53 = scmp.eq.s32.totalorder %s27, 0
      %p54 = por %p52, %p53
      %s56 = sadd.s32 %s55, 1
      %p59 = scmp.eq.s32.totalorder %s21, 1
      %p60 = scmp.ne.s32.totalorder %s55, %s57
      %p61 = scmp.eq.s32.totalorder %s21, 0
      %p62 = por %p60, %p61
      %p63 = scmp.ne.s32.totalorder %s55, %s57
      %p64 = scmp.eq.s32.totalorder %s26, 1
      %p65 = por %p63, %p64
      %p66 = scmp.ne.s32.totalorder %s57, %s58
      %p67 = scmp.eq.s32.totalorder %s26, 0
      %p68 = por %p66, %p67
      %p69 = scmp.ne.s32.totalorder %s57, %s58
      %p70 = scmp.eq.s32.totalorder %s27, 1
      %p71 = por %p69, %p70
      %p73 = scmp.ne.s32.totalorder %s58, %s72
      %p74 = scmp.eq.s32.totalorder %s27, 0
      %p75 = por %p73, %p74
      %s77 = sadd.s32 %s76, 1
      %p80 = scmp.eq.s32.totalorder %s21, 1
      %p81 = scmp.ne.s32.totalorder %s76, %s78
      %p82 = scmp.eq.s32.totalorder %s21, 0
      %p83 = por %p81, %p82
      %p84 = scmp.ne.s32.totalorder %s76, %s78
      %p85 = scmp.eq.s32.totalorder %s26, 1
      %p86 = por %p84, %p85
      %p87 = scmp.ne.s32.totalorder %s78, %s79
      %p88 = scmp.eq.s32.totalorder %s26, 0
      %p89 = por %p87, %p88
      %p90 = scmp.ne.s32.totalorder %s78, %s79
      %p91 = scmp.eq.s32.totalorder %s27, 1
      %p92 = por %p90, %p91
      %p94 = scmp.ne.s32.totalorder %s79, %s93
      %p95 = scmp.eq.s32.totalorder %s27, 0
      %p96 = por %p94, %p95
      %s98 = sadd.s32 %s97, 1
      %p101 = scmp.eq.s32.totalorder %s21, 1
      %p102 = scmp.ne.s32.totalorder %s97, %s99
      %p103 = scmp.eq.s32.totalorder %s21, 0
      %p104 = por %p102, %p103
      %p105 = scmp.ne.s32.totalorder %s97, %s99
      %p106 = scmp.eq.s32.totalorder %s26, 1
      %p107 = por %p105, %p106
      %p108 = scmp.ne.s32.totalorder %s99, %s100
      %p109 = scmp.eq.s32.totalorder %s26, 0
      %p110 = por %p108, %p109
      %p111 = scmp.ne.s32.totalorder %s99, %s100
      %p112 = scmp.eq.s32.totalorder %s27, 1
      %p113 = por %p111, %p112
      %p115 = scmp.ne.s32.totalorder %s100, %s114
      %p116 = scmp.eq.s32.totalorder %s27, 0
      %p117 = por %p115, %p116
      %s119 = sadd.s32 %s118, 1
      %p122 = scmp.eq.s32.totalorder %s21, 1
      %p123 = scmp.ne.s32.totalorder %s118, %s120
      %p124 = scmp.eq.s32.totalorder %s21, 0
      %p125 = por %p123, %p124
      %p126 = scmp.ne.s32.totalorder %s118, %s120
      %p127 = scmp.eq.s32.totalorder %s26, 1
      %p128 = por %p126, %p127
      %p129 = scmp.ne.s32.totalorder %s120, %s121
      %p130 = scmp.eq.s32.totalorder %s26, 0
      %p131 = por %p129, %p130
      %p132 = scmp.ne.s32.totalorder %s120, %s121
      %p133 = scmp.eq.s32.totalorder %s27, 1
      %p134 = por %p132, %p133
      %p136 = scmp.ne.s32.totalorder %s121, %s135
      %p137 = scmp.eq.s32.totalorder %s27, 0
      %p138 = por %p136, %p137
      %s140 = sadd.s32 %s139, 1
      %p143 = scmp.eq.s32.totalorder %s21, 1
      %p144 = scmp.ne.s32.totalorder %s139, %s141
      %p145 = scmp.eq.s32.totalorder %s21, 0
      %p146 = por %p144, %p145
      %p147 = scmp.ne.s32.totalorder %s139, %s141
      %p148 = scmp.eq.s32.totalorder %s26, 1
      %p149 = por %p147, %p148
      %p150 = scmp.ne.s32.totalorder %s141, %s142
      %p151 = scmp.eq.s32.totalorder %s26, 0
      %p152 = por %p150, %p151
      %p153 = scmp.ne.s32.totalorder %s141, %s142
      %p154 = scmp.eq.s32.totalorder %s27, 1
      %p155 = por %p153, %p154
      %p157 = scmp.ne.s32.totalorder %s142, %s156
      %p158 = scmp.eq.s32.totalorder %s27, 0
      %p159 = por %p157, %p158
      %s161 = sadd.s32 %s160, 1
      %p164 = scmp.eq.s32.totalorder %s21, 1
      %p165 = scmp.ne.s32.totalorder %s160, %s162
      %p166 = scmp.eq.s32.totalorder %s21, 0
      %p167 = por %p165, %p166
      %p168 = scmp.ne.s32.totalorder %s160, %s162
      %p169 = scmp.eq.s32.totalorder %s26, 1
      %p170 = por %p168, %p169
      %p171 = scmp.ne.s32.totalorder %s162, %s163
      %p172 = scmp.eq.s32.totalorder %s26, 0
      %p173 = por %p171, %p172
      %p174 = scmp.ne.s32.totalorder %s162, %s163
      %p175 = scmp.eq.s32.totalorder %s27, 1
      %p176 = por %p174, %p175
      %p178 = scmp.ne.s32.totalorder %s163, %s177
      %p179 = scmp.eq.s32.totalorder %s27, 0
      %p180 = por %p178, %p179
      %s181 = ssub.s32 %s21, %s28
      %p182 = scmp.eq.s32.totalorder %s181, 0
      %s184 = sadd.s32 %s183, 1
      %s185 = scalar_select %p182, %s183, %s184
      %p188 = pneg %p182
      %p189 = scmp.eq.s32.totalorder %s21, 1
      %p190 = por %p188, %p189
      %p191 = scmp.ne.s32.totalorder %s183, %s186
      %p192 = scmp.eq.s32.totalorder %s21, 0
      %p193 = por %p191, %p192
      %p194 = scmp.ne.s32.totalorder %s183, %s186
      %p195 = scmp.eq.s32.totalorder %s26, 1
      %p196 = por %p194, %p195
      %p197 = scmp.ne.s32.totalorder %s186, %s187
      %p198 = scmp.eq.s32.totalorder %s26, 0
      %p199 = por %p197, %p198
      %p200 = scmp.ne.s32.totalorder %s186, %s187
      %p201 = scmp.eq.s32.totalorder %s27, 1
      %p202 = por %p200, %p201
      %p204 = scmp.ne.s32.totalorder %s187, %s203
      %p205 = scmp.eq.s32.totalorder %s27, 0
      %p206 = por %p204, %p205
      %p207 = scmp.le.s32.totalorder 1, %s21
      %p208 = scmp.lt.s32.totalorder %s21, 3
      %p209 = pnand %p207, %p208
      %p210 = pneg %p209
      // Predicated region
      $region9: #{tpu_custom_call.1} parent=5 // pred_check
        _
      $region10: #{tpu_custom_call.1} parent=5 // pred_check_branch
        %212 = sbr.rel (%p209) target = $region12
      $region11: #{tpu_custom_call.1} parent=5 // pred_region
        %s213 = ssub.s32 %s21, 1
        // Predicated region
        $region13: #{tpu_custom_call.1} parent=11 // pred_check
          %p214 = pneg %p68
        $region14: #{tpu_custom_call.1} parent=11 // pred_check_branch
          %216 = sbr.rel (%p214) target = $region16
        $region15: #{tpu_custom_call.1} parent=11 // pred_region
          %s218 = ssub.s32 4096, 4096
          %219 = vsyncadd [#allocation6], %s218
          %s220 = sshll.u32 [#allocation5], 4
          %s221 = int_to_ptr.vmem [resolvable:$true] %s220
          %226 = dma.hbm_to_vmem [thread:$0]  %s1, 4096, %s221, [#allocation6], 64, 64, 4
        $region16: #{tpu_custom_call.1} parent=11 // pred_fallthru
          _
        // Predicated region
        $region17: #{tpu_custom_call.1} parent=11 // pred_check
          %p227 = pneg %p89
        $region18: #{tpu_custom_call.1} parent=11 // pred_check_branch
          %229 = sbr.rel (%p227) target = $region20
        $region19: #{tpu_custom_call.1} parent=11 // pred_region
          _
        $region20: #{tpu_custom_call.1} parent=11 // pred_fallthru
          _
        // Predicated region
        $region21: #{tpu_custom_call.1} parent=11 // pred_check
          %p230 = pneg %p110
        $region22: #{tpu_custom_call.1} parent=11 // pred_check_branch
          %232 = sbr.rel (%p230) target = $region24
        $region23: #{tpu_custom_call.1} parent=11 // pred_region
          %s234 = ssub.s32 1024, 1024
          %235 = vsyncadd [#allocation6], %s234
          %s236 = sshll.u32 [#allocation7], 4
          %s237 = int_to_ptr.vmem [resolvable:$true] %s236
          %242 = dma.hbm_to_vmem [thread:$0]  %s3, 1024, %s237, [#allocation6], 64, 64, 4
        $region24: #{tpu_custom_call.1} parent=11 // pred_fallthru
          _
        // Predicated region
        $region25: #{tpu_custom_call.1} parent=11 // pred_check
          %p243 = pneg %p131
        $region26: #{tpu_custom_call.1} parent=11 // pred_check_branch
          %245 = sbr.rel (%p243) target = $region28
        $region27: #{tpu_custom_call.1} parent=11 // pred_region
          _
        $region28: #{tpu_custom_call.1} parent=11 // pred_fallthru
          _
        // Predicated region
        $region29: #{tpu_custom_call.1} parent=11 // pred_check
          %p246 = pneg %p152
        $region30: #{tpu_custom_call.1} parent=11 // pred_check_branch
          %248 = sbr.rel (%p246) target = $region32
        $region31: #{tpu_custom_call.1} parent=11 // pred_region
          %s250 = ssub.s32 1024, 1024
          %251 = vsyncadd [#allocation9], %s250
          %s252 = sshll.u32 [#allocation8], 4
          %s253 = int_to_ptr.vmem [resolvable:$true] %s252
          %258 = dma.hbm_to_vmem [thread:$0]  %s5, 1024, %s253, [#allocation9], 64, 64, 4
        $region32: #{tpu_custom_call.1} parent=11 // pred_fallthru
          _
        // Predicated region
        $region33: #{tpu_custom_call.1} parent=11 // pred_check
          %p259 = pneg %p173
        $region34: #{tpu_custom_call.1} parent=11 // pred_check_branch
          %261 = sbr.rel (%p259) target = $region36
        $region35: #{tpu_custom_call.1} parent=11 // pred_region
          _
        $region36: #{tpu_custom_call.1} parent=11 // pred_fallthru
          _
      $region12: #{tpu_custom_call.1} parent=5 // pred_fallthru
        _
      %p262 = scmp.lt.s32.totalorder %s21, 2
      // Predicated region
      $region37: #{tpu_custom_call.1} parent=5 // pred_check
        %p263 = pneg %p262
      $region38: #{tpu_custom_call.1} parent=5 // pred_check_branch
        %265 = sbr.rel (%p263) target = $region40
      $region39: #{tpu_custom_call.1} parent=5 // pred_region
        // Predicated region
        $region41: #{tpu_custom_call.1} parent=39 // pred_check
          %p266 = pneg %p41
        $region42: #{tpu_custom_call.1} parent=39 // pred_check_branch
          %268 = sbr.rel (%p266) target = $region44
        $region43: #{tpu_custom_call.1} parent=39 // pred_region
          %s269 = sand.u32 %s31, 1
          %s270 = scalar_lea.sflag [#allocation3], %s269
          %s271 = sand.u32 %s31, 1
          %s272 = smul.addr %s271, 16
          %s273 = scalar_lea.vmem [#allocation2], %s272
          %s275 = ssub.s32 256, 256
          %276 = vsyncadd %s270, %s275
          %s277 = smul.addr %s21, 4
          %s278 = smul.addr %s277, 64
          %s279 = scalar_lea.hbm %s0, %s278
          %s281 = sshll.u32 %s273, 4
          %s282 = int_to_ptr.vmem [resolvable:$true] %s281
          %284 = dma.hbm_to_vmem [thread:$0]  %s279, 256, %s282, %s270
        $region44: #{tpu_custom_call.1} parent=39 // pred_fallthru
          _
      $region40: #{tpu_custom_call.1} parent=5 // pred_fallthru
        _
      %p285 = scmp.le.s32.totalorder 1, %s21
      %p286 = scmp.lt.s32.totalorder %s21, 3
      %p287 = pnand %p285, %p286
      %p288 = pneg %p287
      // Predicated region
      $region45: #{tpu_custom_call.1} parent=5 // pred_check
        _
      $region46: #{tpu_custom_call.1} parent=5 // pred_check_branch
        %290 = sbr.rel (%p287) target = $region48
      $region47: #{tpu_custom_call.1} parent=5 // pred_region
        %s291 = ssub.s32 %s21, 1
        %s292 = sand.u32 %s34, 1
        %s293 = scalar_lea.sflag [#allocation3], %s292
        %s294 = sand.u32 %s34, 1
        %s295 = smul.addr %s294, 16
        %s296 = scalar_lea.vmem [#allocation2], %s295
        // Predicated region
        $region49: #{tpu_custom_call.1} parent=47 // pred_check
          %p297 = pneg %p47
        $region50: #{tpu_custom_call.1} parent=47 // pred_check_branch
          %299 = sbr.rel (%p297) target = $region52
        $region51: #{tpu_custom_call.1} parent=47 // pred_region
          %300 = dma.done %s293, 256
        $region52: #{tpu_custom_call.1} parent=47 // pred_fallthru
          _
        // Predicated region
        $region53: #{tpu_custom_call.1} parent=47 // pred_check
          %p301 = pneg %p68
        $region54: #{tpu_custom_call.1} parent=47 // pred_check_branch
          %303 = sbr.rel (%p301) target = $region56
        $region55: #{tpu_custom_call.1} parent=47 // pred_region
          %304 = dma.done [#allocation6], 4096
        $region56: #{tpu_custom_call.1} parent=47 // pred_fallthru
          _
        // Predicated region
        $region57: #{tpu_custom_call.1} parent=47 // pred_check
          %p305 = pneg %p110
        $region58: #{tpu_custom_call.1} parent=47 // pred_check_branch
          %307 = sbr.rel (%p305) target = $region60
        $region59: #{tpu_custom_call.1} parent=47 // pred_region
          %308 = dma.done [#allocation6], 1024
        $region60: #{tpu_custom_call.1} parent=47 // pred_fallthru
          _
        // Predicated region
        $region61: #{tpu_custom_call.1} parent=47 // pred_check
          %p309 = pneg %p152
        $region62: #{tpu_custom_call.1} parent=47 // pred_check_branch
          %311 = sbr.rel (%p309) target = $region64
        $region63: #{tpu_custom_call.1} parent=47 // pred_region
          %312 = dma.done [#allocation9], 1024
        $region64: #{tpu_custom_call.1} parent=47 // pred_fallthru
          _
        %s313 = sand.u32 %s34, 1
        %s314 = scalar_lea.sflag [#allocation3], %s313
        %s315 = sand.u32 %s34, 1
        %s316 = smul.addr %s315, 16
        %s317 = scalar_lea.vmem [#allocation2], %s316
        %p318 = pneg %p47
        %p319 = pneg %p44
        %p320 = pneg %p68
        %p321 = pneg %p65
        %p322 = pneg %p89
        %p323 = pneg %p86
        %p324 = pneg %p110
        %p325 = pneg %p107
        %p326 = pneg %p131
        %p327 = pneg %p128
        %p328 = pneg %p152
        %p329 = pneg %p149
        %p330 = pneg %p173
        %p331 = pneg %p170
        %p332 = pneg %p199
        %p333 = pneg %p196
        %s334 = sand.u32 %s186, 1
        %s335 = scalar_lea.sflag [#allocation4], %s334
        %s336 = sand.u32 %s186, 1
        %s337 = smul.addr %s336, 8
        %s338 = scalar_lea.vmem [#allocation10], %s337
        %v340 = vld [vmem:[%s296] sm:$0xff]
        %v341 = vld [vmem:[%s296 + $0x8] sm:$0xff]
        %v342 = vld [vmem:[#allocation5] sm:$0xf]
        %v343 = vld [vmem:[#allocation5 + $0x4] sm:$0xf]
        %v344 = vld [vmem:[#allocation5 + $0x8] sm:$0xf]
        %v345 = vld [vmem:[#allocation5 + $0xc] sm:$0xf]
        %v346 = vld [vmem:[#allocation5 + $0x10] sm:$0xf]
        %v347 = vld [vmem:[#allocation5 + $0x14] sm:$0xf]
        %v348 = vld [vmem:[#allocation5 + $0x18] sm:$0xf]
        %v349 = vld [vmem:[#allocation5 + $0x1c] sm:$0xf]
        %v350 = vld [vmem:[#allocation5 + $0x20] sm:$0xf]
        %v351 = vld [vmem:[#allocation5 + $0x24] sm:$0xf]
        %v352 = vld [vmem:[#allocation5 + $0x28] sm:$0xf]
        %v353 = vld [vmem:[#allocation5 + $0x2c] sm:$0xf]
        %v354 = vld [vmem:[#allocation5 + $0x30] sm:$0xf]
        %v355 = vld [vmem:[#allocation5 + $0x34] sm:$0xf]
        %v356 = vld [vmem:[#allocation5 + $0x38] sm:$0xf]
        %v357 = vld [vmem:[#allocation5 + $0x3c] sm:$0xf]
        %v358 = vld [vmem:[#allocation5 + $0x40] sm:$0xf]
        %v359 = vld [vmem:[#allocation5 + $0x44] sm:$0xf]
        %v360 = vld [vmem:[#allocation5 + $0x48] sm:$0xf]
        %v361 = vld [vmem:[#allocation5 + $0x4c] sm:$0xf]
        %v362 = vld [vmem:[#allocation5 + $0x50] sm:$0xf]
        %v363 = vld [vmem:[#allocation5 + $0x54] sm:$0xf]
        %v364 = vld [vmem:[#allocation5 + $0x58] sm:$0xf]
        %v365 = vld [vmem:[#allocation5 + $0x5c] sm:$0xf]
        %v366 = vld [vmem:[#allocation5 + $0x60] sm:$0xf]
        %v367 = vld [vmem:[#allocation5 + $0x64] sm:$0xf]
        %v368 = vld [vmem:[#allocation5 + $0x68] sm:$0xf]
        %v369 = vld [vmem:[#allocation5 + $0x6c] sm:$0xf]
        %v370 = vld [vmem:[#allocation5 + $0x70] sm:$0xf]
        %v371 = vld [vmem:[#allocation5 + $0x74] sm:$0xf]
        %v372 = vld [vmem:[#allocation5 + $0x78] sm:$0xf]
        %v373 = vld [vmem:[#allocation5 + $0x7c] sm:$0xf]
        %v374 = vld [vmem:[#allocation5 + $0x80] sm:$0xf]
        %v375 = vld [vmem:[#allocation5 + $0x84] sm:$0xf]
        %v376 = vld [vmem:[#allocation5 + $0x88] sm:$0xf]
        %v377 = vld [vmem:[#allocation5 + $0x8c] sm:$0xf]
        %v378 = vld [vmem:[#allocation5 + $0x90] sm:$0xf]
        %v379 = vld [vmem:[#allocation5 + $0x94] sm:$0xf]
        %v380 = vld [vmem:[#allocation5 + $0x98] sm:$0xf]
        %v381 = vld [vmem:[#allocation5 + $0x9c] sm:$0xf]
        %v382 = vld [vmem:[#allocation5 + $0xa0] sm:$0xf]
        %v383 = vld [vmem:[#allocation5 + $0xa4] sm:$0xf]
        %v384 = vld [vmem:[#allocation5 + $0xa8] sm:$0xf]
        %v385 = vld [vmem:[#allocation5 + $0xac] sm:$0xf]
        %v386 = vld [vmem:[#allocation5 + $0xb0] sm:$0xf]
        %v387 = vld [vmem:[#allocation5 + $0xb4] sm:$0xf]
        %v388 = vld [vmem:[#allocation5 + $0xb8] sm:$0xf]
        %v389 = vld [vmem:[#allocation5 + $0xbc] sm:$0xf]
        %v390 = vld [vmem:[#allocation5 + $0xc0] sm:$0xf]
        %v391 = vld [vmem:[#allocation5 + $0xc4] sm:$0xf]
        %v392 = vld [vmem:[#allocation5 + $0xc8] sm:$0xf]
        %v393 = vld [vmem:[#allocation5 + $0xcc] sm:$0xf]
        %v394 = vld [vmem:[#allocation5 + $0xd0] sm:$0xf]
        %v395 = vld [vmem:[#allocation5 + $0xd4] sm:$0xf]
        %v396 = vld [vmem:[#allocation5 + $0xd8] sm:$0xf]
        %v397 = vld [vmem:[#allocation5 + $0xdc] sm:$0xf]
        %v398 = vld [vmem:[#allocation5 + $0xe0] sm:$0xf]
        %v399 = vld [vmem:[#allocation5 + $0xe4] sm:$0xf]
        %v400 = vld [vmem:[#allocation5 + $0xe8] sm:$0xf]
        %v401 = vld [vmem:[#allocation5 + $0xec] sm:$0xf]
        %v402 = vld [vmem:[#allocation5 + $0xf0] sm:$0xf]
        %v403 = vld [vmem:[#allocation5 + $0xf4] sm:$0xf]
        %v404 = vld [vmem:[#allocation5 + $0xf8] sm:$0xf]
        %v405 = vld [vmem:[#allocation5 + $0xfc] sm:$0xf]
        %v406 = vld [vmem:[%s2] sm:$0x1]
        %v408 = vlaneseq
        %v409 = vshrl.u32 %v408, 7
        %v410 = vsub.s32 0, %v409
        %v411 = vrot.slane %v406, %v410
        %v415 = vunpack.c.l.b16 %v340
        %v416 = vunpack.c.h.b16 %v340
        %v417 = vunpack.c.l.b16 %v341
        %v418 = vunpack.c.h.b16 %v341
        %v419 = vpack.c.b16 %v415, %v415
        %v420 = vpack.c.b16 %v416, %v416
        %v421 = vpack.c.b16 %v417, %v417
        %v422 = vpack.c.b16 %v418, %v418
        %v491 = vunpack.c.l.b16 %v342
        %v492 = vunpack.c.l.b16 %v343
        %v493 = vunpack.c.l.b16 %v344
        %v494 = vunpack.c.l.b16 %v345
        %v495 = vunpack.c.l.b16 %v346
        %v496 = vunpack.c.l.b16 %v347
        %v497 = vunpack.c.l.b16 %v348
        %v498 = vunpack.c.l.b16 %v349
        %v499 = vunpack.c.l.b16 %v350
        %v500 = vunpack.c.l.b16 %v351
        %v501 = vunpack.c.l.b16 %v352
        %v502 = vunpack.c.l.b16 %v353
        %v503 = vunpack.c.l.b16 %v354
        %v504 = vunpack.c.l.b16 %v355
        %v505 = vunpack.c.l.b16 %v356
        %v506 = vunpack.c.l.b16 %v357
        %v507 = vunpack.c.l.b16 %v358
        %v508 = vunpack.c.l.b16 %v359
        %v509 = vunpack.c.l.b16 %v360
        %v510 = vunpack.c.l.b16 %v361
        %v511 = vunpack.c.l.b16 %v362
        %v512 = vunpack.c.l.b16 %v363
        %v513 = vunpack.c.l.b16 %v364
        %v514 = vunpack.c.l.b16 %v365
        %v515 = vunpack.c.l.b16 %v366
        %v516 = vunpack.c.l.b16 %v367
        %v517 = vunpack.c.l.b16 %v368
        %v518 = vunpack.c.l.b16 %v369
        %v519 = vunpack.c.l.b16 %v370
        %v520 = vunpack.c.l.b16 %v371
        %v521 = vunpack.c.l.b16 %v372
        %v522 = vunpack.c.l.b16 %v373
        %v523 = vunpack.c.l.b16 %v374
        %v524 = vunpack.c.l.b16 %v375
        %v525 = vunpack.c.l.b16 %v376
        %v526 = vunpack.c.l.b16 %v377
        %v527 = vunpack.c.l.b16 %v378
        %v528 = vunpack.c.l.b16 %v379
        %v529 = vunpack.c.l.b16 %v380
        %v530 = vunpack.c.l.b16 %v381
        %v531 = vunpack.c.l.b16 %v382
        %v532 = vunpack.c.l.b16 %v383
        %v533 = vunpack.c.l.b16 %v384
        %v534 = vunpack.c.l.b16 %v385
        %v535 = vunpack.c.l.b16 %v386
        %v536 = vunpack.c.l.b16 %v387
        %v537 = vunpack.c.l.b16 %v388
        %v538 = vunpack.c.l.b16 %v389
        %v539 = vunpack.c.l.b16 %v390
        %v540 = vunpack.c.l.b16 %v391
        %v541 = vunpack.c.l.b16 %v392
        %v542 = vunpack.c.l.b16 %v393
        %v543 = vunpack.c.l.b16 %v394
        %v544 = vunpack.c.l.b16 %v395
        %v545 = vunpack.c.l.b16 %v396
        %v546 = vunpack.c.l.b16 %v397
        %v547 = vunpack.c.l.b16 %v398
        %v548 = vunpack.c.l.b16 %v399
        %v549 = vunpack.c.l.b16 %v400
        %v550 = vunpack.c.l.b16 %v401
        %v551 = vunpack.c.l.b16 %v402
        %v552 = vunpack.c.l.b16 %v403
        %v553 = vunpack.c.l.b16 %v404
        %v554 = vunpack.c.l.b16 %v405
        %v555 = vpack.c.b16 %v492, %v491
        %v556 = vpack.c.b16 %v494, %v493
        %v557 = vpack.c.b16 %v496, %v495
        %v558 = vpack.c.b16 %v498, %v497
        %v559 = vpack.c.b16 %v500, %v499
        %v560 = vpack.c.b16 %v502, %v501
        %v561 = vpack.c.b16 %v504, %v503
        %v562 = vpack.c.b16 %v506, %v505
        %v563 = vpack.c.b16 %v508, %v507
        %v564 = vpack.c.b16 %v510, %v509
        %v565 = vpack.c.b16 %v512, %v511
        %v566 = vpack.c.b16 %v514, %v513
        %v567 = vpack.c.b16 %v516, %v515
        %v568 = vpack.c.b16 %v518, %v517
        %v569 = vpack.c.b16 %v520, %v519
        %v570 = vpack.c.b16 %v522, %v521
        %v571 = vpack.c.b16 %v524, %v523
        %v572 = vpack.c.b16 %v526, %v525
        %v573 = vpack.c.b16 %v528, %v527
        %v574 = vpack.c.b16 %v530, %v529
        %v575 = vpack.c.b16 %v532, %v531
        %v576 = vpack.c.b16 %v534, %v533
        %v577 = vpack.c.b16 %v536, %v535
        %v578 = vpack.c.b16 %v538, %v537
        %v579 = vpack.c.b16 %v540, %v539
        %v580 = vpack.c.b16 %v542, %v541
        %v581 = vpack.c.b16 %v544, %v543
        %v582 = vpack.c.b16 %v546, %v545
        %v583 = vpack.c.b16 %v548, %v547
        %v584 = vpack.c.b16 %v550, %v549
        %v585 = vpack.c.b16 %v552, %v551
        %v586 = vpack.c.b16 %v554, %v553
        %619 = vmatprep.subr.bf16.mxu0 0
        %620 = vmatpush1.bf16.msra.mxu0 %v555
        %621 = vmatprep.subr.bf16.mxu0 0
        %622 = vmatpush1.bf16.msra.mxu0 %v556
        %623 = vmatprep.subr.bf16.mxu0 0
        %624 = vmatpush1.bf16.msra.mxu0 %v557
        %625 = vmatprep.subr.bf16.mxu0 0
        %626 = vmatpush1.bf16.msra.mxu0 %v558
        %627 = vmatprep.subr.bf16.mxu0 0
        %628 = vmatpush1.bf16.msra.mxu0 %v559
        %629 = vmatprep.subr.bf16.mxu0 0
        %630 = vmatpush1.bf16.msra.mxu0 %v560
        %631 = vmatprep.subr.bf16.mxu0 0
        %632 = vmatpush1.bf16.msra.mxu0 %v561
        %633 = vmatprep.subr.bf16.mxu0 0
        %634 = vmatpush1.bf16.msra.mxu0 %v562
        %635 = vmatprep.subr.bf16.mxu0 0
        %636 = vmatpush1.bf16.msra.mxu0 %v563
        %637 = vmatprep.subr.bf16.mxu0 0
        %638 = vmatpush1.bf16.msra.mxu0 %v564
        %639 = vmatprep.subr.bf16.mxu0 0
        %640 = vmatpush1.bf16.msra.mxu0 %v565
        %641 = vmatprep.subr.bf16.mxu0 0
        %642 = vmatpush1.bf16.msra.mxu0 %v566
        %643 = vmatprep.subr.bf16.mxu0 0
        %644 = vmatpush1.bf16.msra.mxu0 %v567
        %645 = vmatprep.subr.bf16.mxu0 0
        %646 = vmatpush1.bf16.msra.mxu0 %v568
        %647 = vmatprep.subr.bf16.mxu0 0
        %648 = vmatpush1.bf16.msra.mxu0 %v569
        %649 = vmatprep.subr.bf16.mxu0 0
        %650 = vmatpush1.bf16.msra.mxu0 %v570
        %651 = vmatprep.mubr.bf16.mxu0 %v420
        %652 = vmatmul.mubr.bf16.gmra.mrb[0].mxu0 %v419
        %v653 = vpop.f32.mrb[0].mxu0
        %v654 = vadd.f32 %v411, %v653
        %v655 = vpop.f32.mrb[0].mxu0
        %v656 = vpop.f32.mrb[0].mxu0
        %v657 = vpop.f32.mrb[0].mxu0
        %658 = vdwg.mxu0
        %659 = vmatprep.subr.bf16.mxu0 0
        %660 = vmatpush1.bf16.msra.mxu0 %v571
        %661 = vmatprep.subr.bf16.mxu0 0
        %662 = vmatpush1.bf16.msra.mxu0 %v572
        %663 = vmatprep.subr.bf16.mxu0 0
        %664 = vmatpush1.bf16.msra.mxu0 %v573
        %665 = vmatprep.subr.bf16.mxu0 0
        %666 = vmatpush1.bf16.msra.mxu0 %v574
        %667 = vmatprep.subr.bf16.mxu0 0
        %668 = vmatpush1.bf16.msra.mxu0 %v575
        %669 = vmatprep.subr.bf16.mxu0 0
        %670 = vmatpush1.bf16.msra.mxu0 %v576
        %671 = vmatprep.subr.bf16.mxu0 0
        %672 = vmatpush1.bf16.msra.mxu0 %v577
        %673 = vmatprep.subr.bf16.mxu0 0
        %674 = vmatpush1.bf16.msra.mxu0 %v578
        %675 = vmatprep.subr.bf16.mxu0 0
        %676 = vmatpush1.bf16.msra.mxu0 %v579
        %677 = vmatprep.subr.bf16.mxu0 0
        %678 = vmatpush1.bf16.msra.mxu0 %v580
        %679 = vmatprep.subr.bf16.mxu0 0
        %680 = vmatpush1.bf16.msra.mxu0 %v581
        %681 = vmatprep.subr.bf16.mxu0 0
        %682 = vmatpush1.bf16.msra.mxu0 %v582
        %683 = vmatprep.subr.bf16.mxu0 0
        %684 = vmatpush1.bf16.msra.mxu0 %v583
        %685 = vmatprep.subr.bf16.mxu0 0
        %686 = vmatpush1.bf16.msra.mxu0 %v584
        %687 = vmatprep.subr.bf16.mxu0 0
        %688 = vmatpush1.bf16.msra.mxu0 %v585
        %689 = vmatprep.subr.bf16.mxu0 0
        %690 = vmatpush1.bf16.msra.mxu0 %v586
        %691 = vmatprep.mubr.bf16.mxu0 %v422
        %692 = vmatmul.mubr.bf16.gmra.mrb[0].mxu0 %v421
        %v693 = vpop.f32.mrb[0].mxu0
        %v694 = vadd.f32 %v654, %v693
        %v695 = vpop.f32.mrb[0].mxu0
        %v696 = vpop.f32.mrb[0].mxu0
        %v697 = vpop.f32.mrb[0].mxu0
        %698 = vdwg.mxu0
        %v699 = vmax.f32 %v694, 0.0
        %v700 = vpack.c.bf16 %v699, %v699
        %v701 = vld [vmem:[#allocation7] sm:$0xf]
        %v702 = vld [vmem:[#allocation7 + $0x4] sm:$0xf]
        %v703 = vld [vmem:[#allocation7 + $0x8] sm:$0xf]
        %v704 = vld [vmem:[#allocation7 + $0xc] sm:$0xf]
        %v705 = vld [vmem:[#allocation7 + $0x10] sm:$0xf]
        %v706 = vld [vmem:[#allocation7 + $0x14] sm:$0xf]
        %v707 = vld [vmem:[#allocation7 + $0x18] sm:$0xf]
        %v708 = vld [vmem:[#allocation7 + $0x1c] sm:$0xf]
        %v709 = vld [vmem:[#allocation7 + $0x20] sm:$0xf]
        %v710 = vld [vmem:[#allocation7 + $0x24] sm:$0xf]
        %v711 = vld [vmem:[#allocation7 + $0x28] sm:$0xf]
        %v712 = vld [vmem:[#allocation7 + $0x2c] sm:$0xf]
        %v713 = vld [vmem:[#allocation7 + $0x30] sm:$0xf]
        %v714 = vld [vmem:[#allocation7 + $0x34] sm:$0xf]
        %v715 = vld [vmem:[#allocation7 + $0x38] sm:$0xf]
        %v716 = vld [vmem:[#allocation7 + $0x3c] sm:$0xf]
        %v717 = vld [vmem:[%s4] sm:$0x1]
        %v719 = vlaneseq
        %v720 = vshrl.u32 %v719, 7
        %v721 = vsub.s32 0, %v720
        %v722 = vrot.slane %v717, %v721
        %v740 = vunpack.c.l.b16 %v701
        %v741 = vunpack.c.l.b16 %v702
        %v742 = vunpack.c.l.b16 %v703
        %v743 = vunpack.c.l.b16 %v704
        %v744 = vunpack.c.l.b16 %v705
        %v745 = vunpack.c.l.b16 %v706
        %v746 = vunpack.c.l.b16 %v707
        %v747 = vunpack.c.l.b16 %v708
        %v748 = vunpack.c.l.b16 %v709
        %v749 = vunpack.c.l.b16 %v710
        %v750 = vunpack.c.l.b16 %v711
        %v751 = vunpack.c.l.b16 %v712
        %v752 = vunpack.c.l.b16 %v713
        %v753 = vunpack.c.l.b16 %v714
        %v754 = vunpack.c.l.b16 %v715
        %v755 = vunpack.c.l.b16 %v716
        %v756 = vpack.c.b16 %v741, %v740
        %v757 = vpack.c.b16 %v743, %v742
        %v758 = vpack.c.b16 %v745, %v744
        %v759 = vpack.c.b16 %v747, %v746
        %v760 = vpack.c.b16 %v749, %v748
        %v761 = vpack.c.b16 %v751, %v750
        %v762 = vpack.c.b16 %v753, %v752
        %v763 = vpack.c.b16 %v755, %v754
        %772 = vmatprep.subr.bf16.mxu0 0
        %773 = vmatpush1.bf16.msra.mxu0 %v756
        %774 = vmatprep.subr.bf16.mxu0 0
        %775 = vmatpush1.bf16.msra.mxu0 %v757
        %776 = vmatprep.subr.bf16.mxu0 0
        %777 = vmatpush1.bf16.msra.mxu0 %v758
        %778 = vmatprep.subr.bf16.mxu0 0
        %779 = vmatpush1.bf16.msra.mxu0 %v759
        %780 = vmatprep.subr.bf16.mxu0 0
        %781 = vmatpush1.bf16.msra.mxu0 %v760
        %782 = vmatprep.subr.bf16.mxu0 0
        %783 = vmatpush1.bf16.msra.mxu0 %v761
        %784 = vmatprep.subr.bf16.mxu0 0
        %785 = vmatpush1.bf16.msra.mxu0 %v762
        %786 = vmatprep.subr.bf16.mxu0 0
        %787 = vmatpush1.bf16.msra.mxu0 %v763
        %788 = vmatprep.subr.bf16.mxu0 0
        %789 = vmatpush1.bf16.msra.mxu0 0
        %790 = vmatprep.subr.bf16.mxu0 0
        %791 = vmatpush1.bf16.msra.mxu0 0
        %792 = vmatprep.subr.bf16.mxu0 0
        %793 = vmatpush1.bf16.msra.mxu0 0
        %794 = vmatprep.subr.bf16.mxu0 0
        %795 = vmatpush1.bf16.msra.mxu0 0
        %796 = vmatprep.subr.bf16.mxu0 0
        %797 = vmatpush1.bf16.msra.mxu0 0
        %798 = vmatprep.subr.bf16.mxu0 0
        %799 = vmatpush1.bf16.msra.mxu0 0
        %800 = vmatprep.subr.bf16.mxu0 0
        %801 = vmatpush1.bf16.msra.mxu0 0
        %802 = vmatprep.subr.bf16.mxu0 0
        %803 = vmatpush1.bf16.msra.mxu0 0
        %804 = vmatprep.mubr.bf16.mxu0 0
        %805 = vmatmul.mubr.bf16.gmra.mrb[0].mxu0 %v700
        %v806 = vpop.f32.mrb[0].mxu0
        %v807 = vadd.f32 %v722, %v806
        %v808 = vpop.f32.mrb[0].mxu0
        %v809 = vpop.f32.mrb[0].mxu0
        %v810 = vpop.f32.mrb[0].mxu0
        %811 = vdwg.mxu0
        %v812 = vmax.f32 %v807, 0.0
        %v813 = vpack.c.bf16 %v812, %v812
        %v814 = vld [vmem:[#allocation8] sm:$0xf]
        %v815 = vld [vmem:[#allocation8 + $0x4] sm:$0xf]
        %v816 = vld [vmem:[#allocation8 + $0x8] sm:$0xf]
        %v817 = vld [vmem:[#allocation8 + $0xc] sm:$0xf]
        %v818 = vld [vmem:[#allocation8 + $0x10] sm:$0xf]
        %v819 = vld [vmem:[#allocation8 + $0x14] sm:$0xf]
        %v820 = vld [vmem:[#allocation8 + $0x18] sm:$0xf]
        %v821 = vld [vmem:[#allocation8 + $0x1c] sm:$0xf]
        %v822 = vld [vmem:[#allocation8 + $0x20] sm:$0xf]
        %v823 = vld [vmem:[#allocation8 + $0x24] sm:$0xf]
        %v824 = vld [vmem:[#allocation8 + $0x28] sm:$0xf]
        %v825 = vld [vmem:[#allocation8 + $0x2c] sm:$0xf]
        %v826 = vld [vmem:[#allocation8 + $0x30] sm:$0xf]
        %v827 = vld [vmem:[#allocation8 + $0x34] sm:$0xf]
        %v828 = vld [vmem:[#allocation8 + $0x38] sm:$0xf]
        %v829 = vld [vmem:[#allocation8 + $0x3c] sm:$0xf]
        %v830 = vld [vmem:[%s6] sm:$0x1]
        %v832 = vlaneseq
        %v833 = vshrl.u32 %v832, 7
        %v834 = vsub.s32 0, %v833
        %v835 = vrot.slane %v830, %v834
        %v853 = vunpack.c.l.b16 %v814
        %v854 = vunpack.c.l.b16 %v815
        %v855 = vunpack.c.l.b16 %v816
        %v856 = vunpack.c.l.b16 %v817
        %v857 = vunpack.c.l.b16 %v818
        %v858 = vunpack.c.l.b16 %v819
        %v859 = vunpack.c.l.b16 %v820
        %v860 = vunpack.c.l.b16 %v821
        %v861 = vunpack.c.l.b16 %v822
        %v862 = vunpack.c.l.b16 %v823
        %v863 = vunpack.c.l.b16 %v824
        %v864 = vunpack.c.l.b16 %v825
        %v865 = vunpack.c.l.b16 %v826
        %v866 = vunpack.c.l.b16 %v827
        %v867 = vunpack.c.l.b16 %v828
        %v868 = vunpack.c.l.b16 %v829
        %v869 = vpack.c.b16 %v854, %v853
        %v870 = vpack.c.b16 %v856, %v855
        %v871 = vpack.c.b16 %v858, %v857
        %v872 = vpack.c.b16 %v860, %v859
        %v873 = vpack.c.b16 %v862, %v861
        %v874 = vpack.c.b16 %v864, %v863
        %v875 = vpack.c.b16 %v866, %v865
        %v876 = vpack.c.b16 %v868, %v867
        %885 = vmatprep.subr.bf16.mxu0 0
        %886 = vmatpush1.bf16.msra.mxu0 %v869
        %887 = vmatprep.subr.bf16.mxu0 0
        %888 = vmatpush1.bf16.msra.mxu0 %v870
        %889 = vmatprep.subr.bf16.mxu0 0
        %890 = vmatpush1.bf16.msra.mxu0 %v871
        %891 = vmatprep.subr.bf16.mxu0 0
        %892 = vmatpush1.bf16.msra.mxu0 %v872
        %893 = vmatprep.subr.bf16.mxu0 0
        %894 = vmatpush1.bf16.msra.mxu0 %v873
        %895 = vmatprep.subr.bf16.mxu0 0
        %896 = vmatpush1.bf16.msra.mxu0 %v874
        %897 = vmatprep.subr.bf16.mxu0 0
        %898 = vmatpush1.bf16.msra.mxu0 %v875
        %899 = vmatprep.subr.bf16.mxu0 0
        %900 = vmatpush1.bf16.msra.mxu0 %v876
        %901 = vmatprep.subr.bf16.mxu0 0
        %902 = vmatpush1.bf16.msra.mxu0 0
        %903 = vmatprep.subr.bf16.mxu0 0
        %904 = vmatpush1.bf16.msra.mxu0 0
        %905 = vmatprep.subr.bf16.mxu0 0
        %906 = vmatpush1.bf16.msra.mxu0 0
        %907 = vmatprep.subr.bf16.mxu0 0
        %908 = vmatpush1.bf16.msra.mxu0 0
        %909 = vmatprep.subr.bf16.mxu0 0
        %910 = vmatpush1.bf16.msra.mxu0 0
        %911 = vmatprep.subr.bf16.mxu0 0
        %912 = vmatpush1.bf16.msra.mxu0 0
        %913 = vmatprep.subr.bf16.mxu0 0
        %914 = vmatpush1.bf16.msra.mxu0 0
        %915 = vmatprep.subr.bf16.mxu0 0
        %916 = vmatpush1.bf16.msra.mxu0 0
        %917 = vmatprep.mubr.bf16.mxu0 0
        %918 = vmatmul.mubr.bf16.gmra.mrb[0].mxu0 %v813
        %v919 = vpop.f32.mrb[0].mxu0
        %v920 = vadd.f32 %v835, %v919
        %v921 = vpop.f32.mrb[0].mxu0
        %v922 = vpop.f32.mrb[0].mxu0
        %v923 = vpop.f32.mrb[0].mxu0
        %924 = vdwg.mxu0
        %925 = vst [vmem:[%s338] sm:$0xff] %v920
        %s926 = sand.u32 %s186, 1
        %s927 = scalar_lea.sflag [#allocation4], %s926
        %s928 = sand.u32 %s186, 1
        %s929 = smul.addr %s928, 8
        %s930 = scalar_lea.vmem [#allocation10], %s929
        // Predicated region
        $region65: #{tpu_custom_call.1} parent=47 // pred_check
          %p931 = pneg %p196
        $region66: #{tpu_custom_call.1} parent=47 // pred_check_branch
          %933 = sbr.rel (%p931) target = $region68
        $region67: #{tpu_custom_call.1} parent=47 // pred_region
          %s935 = ssub.s32 128, 128
          %936 = vsyncadd %s927, %s935
          %s937 = smul.addr %s26, 128
          %s938 = scalar_lea.hbm %s7, %s937
          %s940 = sshll.u32 %s930, 4
          %s941 = int_to_ptr.vmem [resolvable:$true] %s940
          %943 = dma.vmem_to_hbm [thread:$0]  %s941, 128, %s938, %s927
        $region68: #{tpu_custom_call.1} parent=47 // pred_fallthru
          _
      $region48: #{tpu_custom_call.1} parent=5 // pred_fallthru
        _
      %p944 = scmp.le.s32.totalorder 2, %s21
      // Predicated region
      $region69: #{tpu_custom_call.1} parent=5 // pred_check
        %p945 = pneg %p944
      $region70: #{tpu_custom_call.1} parent=5 // pred_check_branch
        %947 = sbr.rel (%p945) target = $region72
      $region71: #{tpu_custom_call.1} parent=5 // pred_region
        %s948 = ssub.s32 %s21, 2
        // Predicated region
        $region73: #{tpu_custom_call.1} parent=71 // pred_check
          %p949 = pneg %p202
        $region74: #{tpu_custom_call.1} parent=71 // pred_check_branch
          %951 = sbr.rel (%p949) target = $region76
        $region75: #{tpu_custom_call.1} parent=71 // pred_region
          %s952 = sand.u32 %s187, 1
          %s953 = scalar_lea.sflag [#allocation4], %s952
          %s954 = sand.u32 %s187, 1
          %s955 = smul.addr %s954, 8
          %s956 = scalar_lea.vmem [#allocation10], %s955
          %957 = dma.done %s953, 128
        $region76: #{tpu_custom_call.1} parent=71 // pred_fallthru
          _
      $region72: #{tpu_custom_call.1} parent=5 // pred_fallthru
        _
    $region6: #{tpu_custom_call.1} parent=1 // loop_footer
      %s25 = sadd.s32 1, %s21
    $region7: #{tpu_custom_call.1} parent=1 // loop_footer_branch
      %20 = sbr.rel target = $region3
    $region8: #{tpu_custom_call.1} parent=1 // loop_exit
      _
    %958 = vsyncpa [#allocation3], 1
    %s959 = scalar_lea.sflag [#allocation3], 1
    %960 = vsyncpa %s959, 1
    %961 = vsyncpa [#allocation6], 1
    %962 = vsyncpa [#allocation9], 1
    %963 = vsyncpa [#allocation4], 1
    %s964 = scalar_lea.sflag [#allocation4], 1
    %965 = vsyncpa %s964, 1

</llo_original>
